<compile_context>
chip_gen: v7x
topology: tpu7x:2x2x1
jax: 0.10.0
libtpu: 0.0.40
codegen_flags: <defaults>
</compile_context>

<pallas_src>
import numpy as np
import jax
import jax.numpy as jnp
from jax.experimental import pallas as pl
from jax.experimental.pallas import tpu as pltpu

# ---------------- static model config (mirrors model_config / obs_space) ----------------
B = 8
A_DIM = 4                                     # prod(a_space.shape)
X_DIM = 8                                     # prod(x_space.shape)
SEQ_LEN = 16                                  # prod(x_prev_space) // prod(x_space)
ADAPT_FC_HIDDENS = [32, 32]                   # model_config['adapt_fcnet_hiddens']
ADAPT_CONV_PARAMS = [(16, 4, 2), (16, 3, 1)]  # (num_filters, kernel_size, stride)
ENCODING_SIZE = 16                            # model_config['encoding_size']
Q_HIDDENS = [32, 32]                          # model_config['q_hiddens']
NUM_OUTPUTS = 1
ACT = jnp.tanh                                # model_config['fcnet_activation'] == 'tanh'


def conv_out_len(L, k, s):
    return (L - k) // s + 1


def ceil_to(v, m):
    return ((v + m - 1) // m) * m


# ---------------------------------- Pallas kernel ----------------------------------
def make_kernel(w_layout, b_layout, bsz, seq_len, n_fc, conv_params, n_q):
    bf16 = jnp.bfloat16

    def kernel(adapt_ref, qin_ref, wp_ref, bias_ref, out_ref):
        def W(name):                               # bf16 (rows, cols) weight block
            r0, c0, nr, nc = w_layout[name]        # static python ints
            return wp_ref[r0:r0 + nr, c0:c0 + nc]

        def BIAS(name):                            # f32 (1, width) bias row
            row, width = b_layout[name]
            return bias_ref[row:row + 1, 0:width]

        def dense(x, wname, bname, act=True):
            # dot operands in bf16 (MXU native); accumulate + element-wise stay f32.
            z = jnp.dot(x.astype(bf16), W(wname),
                        preferred_element_type=jnp.float32) + BIAS(bname)
            return ACT(z) if act else z

        Bz = bsz

        # --- adaptation FC stack: one matmul over the whole (S*B, .) slab per layer ---
        h = adapt_ref[...]                         # (S*B, X_DIM+A_DIM), rows = t*B + b
        for i in range(n_fc):
            h = dense(h, f'fc{i}_w', f'fc{i}_b')

        # --- Conv1d layers: stride folded into tap gather + im2col -> 1 matmul each ---
        L = seq_len
        for li, (nf, K, stride) in enumerate(conv_params):
            L_new = conv_out_len(L, K, stride)
            taps = []
            for k in range(K):
                if stride == 1:
                    taps.append(h[k * Bz:(k + L_new) * Bz, :])
                else:                              # gather only the needed 8-row blocks
                    taps.append(jnp.concatenate(
                        [h[(t * stride + k) * Bz:(t * stride + k + 1) * Bz, :]
                         for t in range(L_new)], axis=0))
            x = jnp.concatenate(taps, axis=1)      # (L_new*B, K*C_in) im2col operand
            h = dense(x, f'conv{li}_w', f'conv{li}_b')
            L = L_new

        # --- encoder: relayout (L*B, C) -> (B, L*C) on lanes, then ONE matmul ---
        flat = jnp.concatenate([h[t * Bz:(t + 1) * Bz, :] for t in range(L)], axis=1)
        enc = dense(flat, 'enc_w', 'enc_b', act=False)   # (B, ENCODING_SIZE)

        # --- Q head: layer 0 fused to one matmul over [x_t, a_t, a_next | enc] ---
        hq = jnp.concatenate([qin_ref[...], enc], axis=1)
        hq = dense(hq, 'q0_w', 'q0_b')
        for i in range(1, n_q):
            hq = dense(hq, f'q{i}_w', f'q{i}_b')
        out_ref[...] = dense(hq, 'qo_w', 'qo_b', act=False)

    return kernel


# ---------------------------------- host wrapper ----------------------------------
def make_tcnq_forward(w_layout, b_layout):
    kernel = make_kernel(w_layout, b_layout, B, SEQ_LEN, len(ADAPT_FC_HIDDENS),
                         ADAPT_CONV_PARAMS, len(Q_HIDDENS))
    call = pl.pallas_call(
        kernel,
        out_shape=jax.ShapeDtypeStruct((B, NUM_OUTPUTS), jnp.float32),
        in_specs=[pl.BlockSpec(memory_space=pltpu.MemorySpace.VMEM)] * 4,
        out_specs=pl.BlockSpec(memory_space=pltpu.MemorySpace.VMEM),
    )

    @jax.jit
    def fwd(x_prev_flat, a_prev_flat, x_t, a_t, a_next, wp, bias_buf):
        bsz = x_t.shape[0]
        assert bsz == B and bsz % 8 == 0, "kernel specialized to batch=B (multiple of 8)"
        # mirrors torch: x_prev.reshape((B, -1, x_dim)), a_prev.reshape((B, -1, a_dim))
        x_prev = x_prev_flat.reshape(bsz, -1, x_t.shape[1])
        a_prev = a_prev_flat.reshape(bsz, -1, a_t.shape[1])
        adapt = jnp.concatenate([x_prev, a_prev], axis=2)              # (B, S, C0)
        adapt_tb = jnp.transpose(adapt, (1, 0, 2)).reshape(SEQ_LEN * bsz, -1)
        qin = jnp.concatenate([x_t, a_t, a_next], axis=1)              # (B, X + 2A)
        return call(adapt_tb, qin, wp, bias_buf)

    return fwd


# ---------------------------------- parameter packing ----------------------------------
def pack_params(params):
    """Pack weights into one lane-packed bf16 (rows,128) buffer + one small f32 bias buf."""
    wblocks = {}
    for i, (Wl, _) in enumerate(params['fc']):
        wblocks[f'fc{i}_w'] = np.asarray(Wl)                        # (in, out)
    for li, (W3, _) in enumerate(params['conv']):                   # (K, C_in, C_out)
        K, cin, cout = W3.shape
        wblocks[f'conv{li}_w'] = np.asarray(W3).reshape(K * cin, cout)  # im2col stacked
    wblocks['enc_w'] = np.asarray(params['enc'][0])                 # (L*C, E), l-major rows

    # Q layer 0: permute rows so input order is [x_t, a_t, a_next | enc]
    W0, _ = params['q'][0]
    n_pre = X_DIM + A_DIM
    perm = (list(range(0, n_pre))
            + list(range(n_pre + ENCODING_SIZE, n_pre + ENCODING_SIZE + A_DIM))
            + list(range(n_pre, n_pre + ENCODING_SIZE)))
    wblocks['q0_w'] = np.asarray(W0)[np.asarray(perm), :]
    for i in range(1, len(params['q'])):
        wblocks[f'q{i}_w'] = np.asarray(params['q'][i][0])
    wblocks['qo_w'] = np.asarray(params['qo'][0])

    # lane-packed shelf layout: 32-wide blocks 4-per-band, <=16-wide blocks 8-per-band
    names = list(wblocks.keys())
    wide = [n for n in names if wblocks[n].shape[1] > 16]
    narrow = [n for n in names if wblocks[n].shape[1] <= 16]
    bands = ([(wide[i:i + 4], 32) for i in range(0, len(wide), 4)]
             + [(narrow[i:i + 8], 16) for i in range(0, len(narrow), 8)])

    w_layout, row = {}, 0
    for band_names, slot in bands:
        height = 0
        for j, name in enumerate(band_names):
            r, c = wblocks[name].shape
            assert c <= slot
            w_layout[name] = (int(row), int(j * slot), int(r), int(c))
            height = max(height, ceil_to(r, 16))       # keep bf16 sublane-tile alignment
        row += height
    total_rows = max(ceil_to(row, 16), 16)
    wp = np.zeros((total_rows, 128), np.float32)
    for name, a in wblocks.items():
        r0, c0, nr, nc = w_layout[name]
        wp[r0:r0 + nr, c0:c0 + nc] = a
    wp = jnp.asarray(wp).astype(jnp.bfloat16)

    # biases: one tiny f32 buffer, one bias per row (element-wise math stays f32)
    bias_entries = ([(f'fc{i}_b', params['fc'][i][1]) for i in range(len(params['fc']))]
                    + [(f'conv{i}_b', params['conv'][i][1]) for i in range(len(params['conv']))]
                    + [('enc_b', params['enc'][1])]
                    + [(f'q{i}_b', params['q'][i][1]) for i in range(len(params['q']))]
                    + [('qo_b', params['qo'][1])])
    nrows = max(8, ceil_to(len(bias_entries), 8))
    bias_buf = np.zeros((nrows, 128), np.float32)
    b_layout = {}
    for i, (name, b) in enumerate(bias_entries):
        width = int(np.asarray(b).size)
        b_layout[name] = (int(i), width)
        bias_buf[i, :width] = np.asarray(b).reshape(-1)
    return wp, jnp.asarray(bias_buf), w_layout, b_layout


# ---------------------------------- parameter init ----------------------------------
def init_params(key):
    """Deterministic synthetic weights, generated in torch layout then converted."""
    keys = iter(jax.random.split(key, 64))

    def nrm(shape, scale=0.1):
        return scale * jax.random.normal(next(keys), shape, dtype=jnp.float32)

    params = {'fc': [], 'conv': [], 'q': []}

    # adapt FC layers: torch Linear weight (out, in) -> kernel (in, out)
    prev = X_DIM + A_DIM
    for h in ADAPT_FC_HIDDENS:
        w_t = nrm((h, prev)); b_t = nrm((h,))
        params['fc'].append((w_t.T, b_t.reshape(1, h)))
        prev = h

    # adapt Conv1d layers: torch weight (C_out, C_in, K) -> kernel (K, C_in, C_out)
    c_in, L = prev, SEQ_LEN
    for nf, k, s in ADAPT_CONV_PARAMS:
        w_t = nrm((nf, c_in, k)); b_t = nrm((nf,))
        params['conv'].append((jnp.transpose(w_t, (2, 1, 0)), b_t.reshape(1, nf)))
        c_in, L = nf, conv_out_len(L, k, s)

    # encoder Linear over torch Flatten of (B, C, L): torch weight (E, C*L) with
    # column index c*L + l  ->  kernel weight (L*C, E) with row index l*C + c
    w_t = nrm((ENCODING_SIZE, c_in * L)); b_t = nrm((ENCODING_SIZE,))
    w_k = jnp.transpose(w_t.reshape(ENCODING_SIZE, c_in, L), (2, 1, 0)).reshape(
        L * c_in, ENCODING_SIZE)
    params['enc'] = (w_k, b_t.reshape(1, ENCODING_SIZE))

    # Q head
    prev = ENCODING_SIZE + X_DIM + 2 * A_DIM
    for h in Q_HIDDENS:
        w_t = nrm((h, prev)); b_t = nrm((h,))
        params['q'].append((w_t.T, b_t.reshape(1, h)))
        prev = h
    w_t = nrm((NUM_OUTPUTS, prev)); b_t = nrm((NUM_OUTPUTS,))
    params['qo'] = (w_t.T, b_t.reshape(1, NUM_OUTPUTS))

    wp, bias_buf, w_layout, b_layout = pack_params(params)
    params['wp'], params['bias'] = wp, bias_buf
    params['w_layout'], params['b_layout'] = w_layout, b_layout
    return params


# ---------------------------------- pure-JAX reference ----------------------------------
def reference(x_prev_flat, a_prev_flat, x_t, a_t, a_next, params):
    hp = jax.lax.Precision.HIGHEST            # true-f32 reference of the torch module
    bsz = x_t.shape[0]
    x_prev = x_prev_flat.reshape(bsz, -1, x_t.shape[1])
    a_prev = a_prev_flat.reshape(bsz, -1, a_t.shape[1])
    h = jnp.concatenate([x_prev, a_prev], axis=2)
    for W, b in params['fc']:
        h = jnp.tanh(jnp.dot(h, W, precision=hp) + b)
    for (nf, K, s), (W, b) in zip(ADAPT_CONV_PARAMS, params['conv']):
        _, L, _ = h.shape
        L_new = conv_out_len(L, K, s)
        outs = []
        for t in range(L_new):
            acc = jnp.zeros((bsz, nf), jnp.float32) + b
            for k in range(K):
                acc = acc + jnp.dot(h[:, t * s + k, :], W[k], precision=hp)
            outs.append(jnp.tanh(acc))
        h = jnp.stack(outs, axis=1)
    flat = h.reshape(bsz, -1)                 # l-major flatten (matches converted enc_w)
    enc = jnp.dot(flat, params['enc'][0], precision=hp) + params['enc'][1]
    hq = jnp.concatenate([x_t, a_t, enc, a_next], axis=1)
    for W, b in params['q']:
        hq = jnp.tanh(jnp.dot(hq, W, precision=hp) + b)
    Wq, bq = params['qo']
    return jnp.dot(hq, Wq, precision=hp) + bq


# ---------------------------------- main ----------------------------------
if __name__ == "__main__":
    root = jax.random.PRNGKey(0)
    k_param, k1, k2, k3, k4, k5 = jax.random.split(root, 6)
    params = init_params(k_param)

    # obs tuple pieces (flat, exactly as the torch forward receives them)
    x_prev = jax.random.normal(k1, (B, SEQ_LEN * X_DIM), jnp.float32)   # obs[3]
    a_prev = jax.random.normal(k2, (B, SEQ_LEN * A_DIM), jnp.float32)   # obs[0]
    x_t = jax.random.normal(k3, (B, X_DIM), jnp.float32)                # obs[4]
    a_t = jax.random.normal(k4, (B, A_DIM), jnp.float32)                # obs[1]
    a_next = jax.random.normal(k5, (B, A_DIM), jnp.float32)             # obs[5]

    fwd = make_tcnq_forward(params['w_layout'], params['b_layout'])
    q = fwd(x_prev, a_prev, x_t, a_t, a_next, params['wp'], params['bias'])
    q = jax.block_until_ready(q)

    q_ref = reference(x_prev, a_prev, x_t, a_t, a_next, params)
    assert q.shape == (B, NUM_OUTPUTS)
    # Kernel dots run bf16 x bf16 -> f32 on the MXU (weights packed in bf16); the
    # reference is true f32, so allow a bf16-quantization-sized tolerance.  A
    # structural bug would produce O(0.1-1) errors, far above this bound.
    assert jnp.max(jnp.abs(q - q_ref)) < 1e-2, "kernel/reference mismatch"

    print("KERNEL_OK")
</pallas_src>

<mosaic_0001>
module attributes {stable_mosaic.version = 11 : i64} {
  func.func @kernel(%arg0: memref<128x12xf32, #tpu.memory_space<vmem>>, %arg1: memref<8x16xf32, #tpu.memory_space<vmem>>, %arg2: memref<160x128xbf16, #tpu.memory_space<vmem>>, %arg3: memref<8x128xf32, #tpu.memory_space<vmem>>, %arg4: memref<8x1xf32, #tpu.memory_space<vmem>>) attributes {dimension_semantics = [], scalar_prefetch = 0 : i64, scratch_operands = 0 : i64, tpu.core_type = #tpu.core_type<tc>} {
    %c0 = arith.constant 0 : index
    %c0_0 = arith.constant 0 : index
    %0 = vector.load %arg0[%c0, %c0_0] : memref<128x12xf32, #tpu.memory_space<vmem>>, vector<128x12xf32>
    %1 = arith.truncf %0 : vector<128x12xf32> to vector<128x12xbf16>
    %c0_1 = arith.constant 0 : index
    %c0_2 = arith.constant 0 : index
    %2 = vector.load %arg2[%c0_1, %c0_2] : memref<160x128xbf16, #tpu.memory_space<vmem>>, vector<12x32xbf16>
    %cst = arith.constant dense<0.000000e+00> : vector<128x32xf32>
    %3 = tpu.matmul %1, %2, %cst {dimension_numbers = #tpu.dot_dimension_numbers<[1], [0], [0], [1], [0, 0, 1, 1], [], []>} : vector<128x12xbf16>, vector<12x32xbf16>, vector<128x32xf32> -> vector<128x32xf32>
    %c0_3 = arith.constant 0 : index
    %c0_4 = arith.constant 0 : index
    %4 = vector.load %arg3[%c0_3, %c0_4] : memref<8x128xf32, #tpu.memory_space<vmem>>, vector<1x32xf32>
    %5 = vector.broadcast %4 : vector<1x32xf32> to vector<128x32xf32>
    %6 = arith.addf %3, %5 : vector<128x32xf32>
    %7 = math.tanh %6 : vector<128x32xf32>
    %8 = arith.truncf %7 : vector<128x32xf32> to vector<128x32xbf16>
    %c0_5 = arith.constant 0 : index
    %c32 = arith.constant 32 : index
    %9 = vector.load %arg2[%c0_5, %c32] : memref<160x128xbf16, #tpu.memory_space<vmem>>, vector<32x32xbf16>
    %cst_6 = arith.constant dense<0.000000e+00> : vector<128x32xf32>
    %10 = tpu.matmul %8, %9, %cst_6 {dimension_numbers = #tpu.dot_dimension_numbers<[1], [0], [0], [1], [0, 0, 1, 1], [], []>} : vector<128x32xbf16>, vector<32x32xbf16>, vector<128x32xf32> -> vector<128x32xf32>
    %c1 = arith.constant 1 : index
    %c0_7 = arith.constant 0 : index
    %11 = vector.load %arg3[%c1, %c0_7] : memref<8x128xf32, #tpu.memory_space<vmem>>, vector<1x32xf32>
    %12 = vector.broadcast %11 : vector<1x32xf32> to vector<128x32xf32>
    %13 = arith.addf %10, %12 : vector<128x32xf32>
    %14 = math.tanh %13 : vector<128x32xf32>
    %15 = vector.extract_strided_slice %14 {offsets = [0, 0], sizes = [8, 32], strides = [1, 1]} : vector<128x32xf32> to vector<8x32xf32>
    %16 = vector.extract_strided_slice %14 {offsets = [16, 0], sizes = [8, 32], strides = [1, 1]} : vector<128x32xf32> to vector<8x32xf32>
    %17 = vector.extract_strided_slice %14 {offsets = [32, 0], sizes = [8, 32], strides = [1, 1]} : vector<128x32xf32> to vector<8x32xf32>
    %18 = vector.extract_strided_slice %14 {offsets = [48, 0], sizes = [8, 32], strides = [1, 1]} : vector<128x32xf32> to vector<8x32xf32>
    %19 = vector.extract_strided_slice %14 {offsets = [64, 0], sizes = [8, 32], strides = [1, 1]} : vector<128x32xf32> to vector<8x32xf32>
    %20 = vector.extract_strided_slice %14 {offsets = [80, 0], sizes = [8, 32], strides = [1, 1]} : vector<128x32xf32> to vector<8x32xf32>
    %21 = vector.extract_strided_slice %14 {offsets = [96, 0], sizes = [8, 32], strides = [1, 1]} : vector<128x32xf32> to vector<8x32xf32>
    %22 = tpu.concatenate %15, %16, %17, %18, %19, %20, %21 in 0 : vector<8x32xf32>, vector<8x32xf32>, vector<8x32xf32>, vector<8x32xf32>, vector<8x32xf32>, vector<8x32xf32>, vector<8x32xf32> -> vector<56x32xf32>
    %23 = vector.extract_strided_slice %14 {offsets = [8, 0], sizes = [8, 32], strides = [1, 1]} : vector<128x32xf32> to vector<8x32xf32>
    %24 = vector.extract_strided_slice %14 {offsets = [24, 0], sizes = [8, 32], strides = [1, 1]} : vector<128x32xf32> to vector<8x32xf32>
    %25 = vector.extract_strided_slice %14 {offsets = [40, 0], sizes = [8, 32], strides = [1, 1]} : vector<128x32xf32> to vector<8x32xf32>
    %26 = vector.extract_strided_slice %14 {offsets = [56, 0], sizes = [8, 32], strides = [1, 1]} : vector<128x32xf32> to vector<8x32xf32>
    %27 = vector.extract_strided_slice %14 {offsets = [72, 0], sizes = [8, 32], strides = [1, 1]} : vector<128x32xf32> to vector<8x32xf32>
    %28 = vector.extract_strided_slice %14 {offsets = [88, 0], sizes = [8, 32], strides = [1, 1]} : vector<128x32xf32> to vector<8x32xf32>
    %29 = vector.extract_strided_slice %14 {offsets = [104, 0], sizes = [8, 32], strides = [1, 1]} : vector<128x32xf32> to vector<8x32xf32>
    %30 = tpu.concatenate %23, %24, %25, %26, %27, %28, %29 in 0 : vector<8x32xf32>, vector<8x32xf32>, vector<8x32xf32>, vector<8x32xf32>, vector<8x32xf32>, vector<8x32xf32>, vector<8x32xf32> -> vector<56x32xf32>
    %31 = vector.extract_strided_slice %14 {offsets = [16, 0], sizes = [8, 32], strides = [1, 1]} : vector<128x32xf32> to vector<8x32xf32>
    %32 = vector.extract_strided_slice %14 {offsets = [32, 0], sizes = [8, 32], strides = [1, 1]} : vector<128x32xf32> to vector<8x32xf32>
    %33 = vector.extract_strided_slice %14 {offsets = [48, 0], sizes = [8, 32], strides = [1, 1]} : vector<128x32xf32> to vector<8x32xf32>
    %34 = vector.extract_strided_slice %14 {offsets = [64, 0], sizes = [8, 32], strides = [1, 1]} : vector<128x32xf32> to vector<8x32xf32>
    %35 = vector.extract_strided_slice %14 {offsets = [80, 0], sizes = [8, 32], strides = [1, 1]} : vector<128x32xf32> to vector<8x32xf32>
    %36 = vector.extract_strided_slice %14 {offsets = [96, 0], sizes = [8, 32], strides = [1, 1]} : vector<128x32xf32> to vector<8x32xf32>
    %37 = vector.extract_strided_slice %14 {offsets = [112, 0], sizes = [8, 32], strides = [1, 1]} : vector<128x32xf32> to vector<8x32xf32>
    %38 = tpu.concatenate %31, %32, %33, %34, %35, %36, %37 in 0 : vector<8x32xf32>, vector<8x32xf32>, vector<8x32xf32>, vector<8x32xf32>, vector<8x32xf32>, vector<8x32xf32>, vector<8x32xf32> -> vector<56x32xf32>
    %39 = vector.extract_strided_slice %14 {offsets = [24, 0], sizes = [8, 32], strides = [1, 1]} : vector<128x32xf32> to vector<8x32xf32>
    %40 = vector.extract_strided_slice %14 {offsets = [40, 0], sizes = [8, 32], strides = [1, 1]} : vector<128x32xf32> to vector<8x32xf32>
    %41 = vector.extract_strided_slice %14 {offsets = [56, 0], sizes = [8, 32], strides = [1, 1]} : vector<128x32xf32> to vector<8x32xf32>
    %42 = vector.extract_strided_slice %14 {offsets = [72, 0], sizes = [8, 32], strides = [1, 1]} : vector<128x32xf32> to vector<8x32xf32>
    %43 = vector.extract_strided_slice %14 {offsets = [88, 0], sizes = [8, 32], strides = [1, 1]} : vector<128x32xf32> to vector<8x32xf32>
    %44 = vector.extract_strided_slice %14 {offsets = [104, 0], sizes = [8, 32], strides = [1, 1]} : vector<128x32xf32> to vector<8x32xf32>
    %45 = vector.extract_strided_slice %14 {offsets = [120, 0], sizes = [8, 32], strides = [1, 1]} : vector<128x32xf32> to vector<8x32xf32>
    %46 = tpu.concatenate %39, %40, %41, %42, %43, %44, %45 in 0 : vector<8x32xf32>, vector<8x32xf32>, vector<8x32xf32>, vector<8x32xf32>, vector<8x32xf32>, vector<8x32xf32>, vector<8x32xf32> -> vector<56x32xf32>
    %47 = tpu.concatenate %22, %30, %38, %46 in 1 : vector<56x32xf32>, vector<56x32xf32>, vector<56x32xf32>, vector<56x32xf32> -> vector<56x128xf32>
    %48 = arith.truncf %47 : vector<56x128xf32> to vector<56x128xbf16>
    %c32_8 = arith.constant 32 : index
    %c0_9 = arith.constant 0 : index
    %49 = vector.load %arg2[%c32_8, %c0_9] : memref<160x128xbf16, #tpu.memory_space<vmem>>, vector<128x16xbf16>
    %cst_10 = arith.constant dense<0.000000e+00> : vector<56x16xf32>
    %50 = tpu.matmul %48, %49, %cst_10 {dimension_numbers = #tpu.dot_dimension_numbers<[1], [0], [0], [1], [0, 0, 1, 1], [], []>} : vector<56x128xbf16>, vector<128x16xbf16>, vector<56x16xf32> -> vector<56x16xf32>
    %c2 = arith.constant 2 : index
    %c0_11 = arith.constant 0 : index
    %51 = vector.load %arg3[%c2, %c0_11] : memref<8x128xf32, #tpu.memory_space<vmem>>, vector<1x16xf32>
    %52 = vector.broadcast %51 : vector<1x16xf32> to vector<56x16xf32>
    %53 = arith.addf %50, %52 : vector<56x16xf32>
    %54 = math.tanh %53 : vector<56x16xf32>
    %55 = vector.extract_strided_slice %54 {offsets = [0, 0], sizes = [40, 16], strides = [1, 1]} : vector<56x16xf32> to vector<40x16xf32>
    %56 = vector.extract_strided_slice %54 {offsets = [8, 0], sizes = [40, 16], strides = [1, 1]} : vector<56x16xf32> to vector<40x16xf32>
    %57 = vector.extract_strided_slice %54 {offsets = [16, 0], sizes = [40, 16], strides = [1, 1]} : vector<56x16xf32> to vector<40x16xf32>
    %58 = tpu.concatenate %55, %56, %57 in 1 : vector<40x16xf32>, vector<40x16xf32>, vector<40x16xf32> -> vector<40x48xf32>
    %59 = arith.truncf %58 : vector<40x48xf32> to vector<40x48xbf16>
    %c32_12 = arith.constant 32 : index
    %c16 = arith.constant 16 : index
    %60 = vector.load %arg2[%c32_12, %c16] : memref<160x128xbf16, #tpu.memory_space<vmem>>, vector<48x16xbf16>
    %cst_13 = arith.constant dense<0.000000e+00> : vector<40x16xf32>
    %61 = tpu.matmul %59, %60, %cst_13 {dimension_numbers = #tpu.dot_dimension_numbers<[1], [0], [0], [1], [0, 0, 1, 1], [], []>} : vector<40x48xbf16>, vector<48x16xbf16>, vector<40x16xf32> -> vector<40x16xf32>
    %c3 = arith.constant 3 : index
    %c0_14 = arith.constant 0 : index
    %62 = vector.load %arg3[%c3, %c0_14] : memref<8x128xf32, #tpu.memory_space<vmem>>, vector<1x16xf32>
    %63 = vector.broadcast %62 : vector<1x16xf32> to vector<40x16xf32>
    %64 = arith.addf %61, %63 : vector<40x16xf32>
    %65 = math.tanh %64 : vector<40x16xf32>
    %66 = vector.extract_strided_slice %65 {offsets = [0, 0], sizes = [8, 16], strides = [1, 1]} : vector<40x16xf32> to vector<8x16xf32>
    %67 = vector.extract_strided_slice %65 {offsets = [8, 0], sizes = [8, 16], strides = [1, 1]} : vector<40x16xf32> to vector<8x16xf32>
    %68 = vector.extract_strided_slice %65 {offsets = [16, 0], sizes = [8, 16], strides = [1, 1]} : vector<40x16xf32> to vector<8x16xf32>
    %69 = vector.extract_strided_slice %65 {offsets = [24, 0], sizes = [8, 16], strides = [1, 1]} : vector<40x16xf32> to vector<8x16xf32>
    %70 = vector.extract_strided_slice %65 {offsets = [32, 0], sizes = [8, 16], strides = [1, 1]} : vector<40x16xf32> to vector<8x16xf32>
    %71 = tpu.concatenate %66, %67, %68, %69, %70 in 1 : vector<8x16xf32>, vector<8x16xf32>, vector<8x16xf32>, vector<8x16xf32>, vector<8x16xf32> -> vector<8x80xf32>
    %72 = arith.truncf %71 : vector<8x80xf32> to vector<8x80xbf16>
    %c32_15 = arith.constant 32 : index
    %c32_16 = arith.constant 32 : index
    %73 = vector.load %arg2[%c32_15, %c32_16] : memref<160x128xbf16, #tpu.memory_space<vmem>>, vector<80x16xbf16>
    %cst_17 = arith.constant dense<0.000000e+00> : vector<8x16xf32>
    %74 = tpu.matmul %72, %73, %cst_17 {dimension_numbers = #tpu.dot_dimension_numbers<[1], [0], [0], [1], [0, 0, 1, 1], [], []>} : vector<8x80xbf16>, vector<80x16xbf16>, vector<8x16xf32> -> vector<8x16xf32>
    %c4 = arith.constant 4 : index
    %c0_18 = arith.constant 0 : index
    %75 = vector.load %arg3[%c4, %c0_18] : memref<8x128xf32, #tpu.memory_space<vmem>>, vector<1x16xf32>
    %76 = vector.broadcast %75 : vector<1x16xf32> to vector<8x16xf32>
    %77 = arith.addf %74, %76 : vector<8x16xf32>
    %c0_19 = arith.constant 0 : index
    %c0_20 = arith.constant 0 : index
    %78 = vector.load %arg1[%c0_19, %c0_20] : memref<8x16xf32, #tpu.memory_space<vmem>>, vector<8x16xf32>
    %79 = tpu.concatenate %78, %77 in 1 : vector<8x16xf32>, vector<8x16xf32> -> vector<8x32xf32>
    %80 = arith.truncf %79 : vector<8x32xf32> to vector<8x32xbf16>
    %c0_21 = arith.constant 0 : index
    %c64 = arith.constant 64 : index
    %81 = vector.load %arg2[%c0_21, %c64] : memref<160x128xbf16, #tpu.memory_space<vmem>>, vector<32x32xbf16>
    %cst_22 = arith.constant dense<0.000000e+00> : vector<8x32xf32>
    %82 = tpu.matmul %80, %81, %cst_22 {dimension_numbers = #tpu.dot_dimension_numbers<[1], [0], [0], [1], [0, 0, 1, 1], [], []>} : vector<8x32xbf16>, vector<32x32xbf16>, vector<8x32xf32> -> vector<8x32xf32>
    %c5 = arith.constant 5 : index
    %c0_23 = arith.constant 0 : index
    %83 = vector.load %arg3[%c5, %c0_23] : memref<8x128xf32, #tpu.memory_space<vmem>>, vector<1x32xf32>
    %84 = vector.broadcast %83 : vector<1x32xf32> to vector<8x32xf32>
    %85 = arith.addf %82, %84 : vector<8x32xf32>
    %86 = math.tanh %85 : vector<8x32xf32>
    %87 = arith.truncf %86 : vector<8x32xf32> to vector<8x32xbf16>
    %c0_24 = arith.constant 0 : index
    %c96 = arith.constant 96 : index
    %88 = vector.load %arg2[%c0_24, %c96] : memref<160x128xbf16, #tpu.memory_space<vmem>>, vector<32x32xbf16>
    %cst_25 = arith.constant dense<0.000000e+00> : vector<8x32xf32>
    %89 = tpu.matmul %87, %88, %cst_25 {dimension_numbers = #tpu.dot_dimension_numbers<[1], [0], [0], [1], [0, 0, 1, 1], [], []>} : vector<8x32xbf16>, vector<32x32xbf16>, vector<8x32xf32> -> vector<8x32xf32>
    %c6 = arith.constant 6 : index
    %c0_26 = arith.constant 0 : index
    %90 = vector.load %arg3[%c6, %c0_26] : memref<8x128xf32, #tpu.memory_space<vmem>>, vector<1x32xf32>
    %91 = vector.broadcast %90 : vector<1x32xf32> to vector<8x32xf32>
    %92 = arith.addf %89, %91 : vector<8x32xf32>
    %93 = math.tanh %92 : vector<8x32xf32>
    %94 = arith.truncf %93 : vector<8x32xf32> to vector<8x32xbf16>
    %c32_27 = arith.constant 32 : index
    %c48 = arith.constant 48 : index
    %95 = vector.load %arg2[%c32_27, %c48] : memref<160x128xbf16, #tpu.memory_space<vmem>>, vector<32x1xbf16>
    %cst_28 = arith.constant dense<0.000000e+00> : vector<8x1xf32>
    %96 = tpu.matmul %94, %95, %cst_28 {dimension_numbers = #tpu.dot_dimension_numbers<[1], [0], [0], [1], [0, 0, 1, 1], [], []>} : vector<8x32xbf16>, vector<32x1xbf16>, vector<8x1xf32> -> vector<8x1xf32>
    %c7 = arith.constant 7 : index
    %c0_29 = arith.constant 0 : index
    %97 = vector.load %arg3[%c7, %c0_29] : memref<8x128xf32, #tpu.memory_space<vmem>>, vector<1x1xf32>
    %98 = vector.broadcast %97 : vector<1x1xf32> to vector<8x1xf32>
    %99 = arith.addf %96, %98 : vector<8x1xf32>
    %c0_30 = arith.constant 0 : index
    %c0_31 = arith.constant 0 : index
    %100 = vector.load %arg4[%c0_30, %c0_31] : memref<8x1xf32, #tpu.memory_space<vmem>>, vector<8x1xf32>
    tpu.vector_store %arg4[%c0_30, %c0_31], %99 {strides = array<i32>} : memref<8x1xf32, #tpu.memory_space<vmem>>, vector<8x1xf32>,
    return
  }
}

</mosaic_0001>

<llo_original>
// kernel: fwd.1
$region0: #{fwd.1}
  #allocation0 [shape = 'u32[]', space=smem, size = 0x4, offset = 0x4, fixed_abs, tag = 'smem constant byte address 0x4 - core index']
  #allocation1 [shape = 'u32[144,128]{1,0:T(1,128)}', space=vmem, size = 0x12000, scoped, tag = 'internal scratch']
  %s0 = inlined_call_operand.vmem [shape: f32[128,12], index: 0, kind: input, shape index: {}]
  %s1 = inlined_call_operand.vmem [shape: f32[8,16], index: 1, kind: input, shape index: {}]
  %s2 = inlined_call_operand.vmem [shape: bf16[160,128], index: 2, kind: input, shape index: {}]
  %s3 = inlined_call_operand.vmem [shape: f32[8,128], index: 3, kind: input, shape index: {}]
  %s4 = inlined_call_operand.vmem [shape: f32[8,1], index: 4, kind: output, shape index: {}]
  %s5 = sld [smem:[#allocation0]]
  $region26: #{fwd.1} parent=0
    _
  %s7 = ssub.s32 1, %s5
  %s8 = scalar_select 0, %s7, %s5
  // Predicated region
  $region2: #{fwd.1} parent=0 // pred_check
    _
  $region3: #{fwd.1} parent=0 // pred_check_branch
    %10 = sbr.rel (0) target = $region5
  $region4: #{fwd.1} parent=0 // pred_region
    _
  $region5: #{fwd.1} parent=0 // pred_fallthru
    _
  // Predicated region
  $region6: #{fwd.1} parent=0 // pred_check
    _
  $region7: #{fwd.1} parent=0 // pred_check_branch
    %12 = sbr.rel (0) target = $region9
  $region8: #{fwd.1} parent=0 // pred_region
    _
  $region9: #{fwd.1} parent=0 // pred_fallthru
    _
  // Predicated region
  $region10: #{fwd.1} parent=0 // pred_check
    _
  $region11: #{fwd.1} parent=0 // pred_check_branch
    %14 = sbr.rel (0) target = $region13
  $region12: #{fwd.1} parent=0 // pred_region
    _
  $region13: #{fwd.1} parent=0 // pred_fallthru
    _
  // Predicated region
  $region14: #{fwd.1} parent=0 // pred_check
    _
  $region15: #{fwd.1} parent=0 // pred_check_branch
    %16 = sbr.rel (0) target = $region17
  $region16: #{fwd.1} parent=0 // pred_region
    _
  $region17: #{fwd.1} parent=0 // pred_fallthru
    _
  %v18 = vld [vmem:[%s0] sm:$0xff]
  %v19 = vld [vmem:[%s0 + $0x8] sm:$0xff]
  %v20 = vld [vmem:[%s0 + $0x10] sm:$0xff]
  %v21 = vld [vmem:[%s0 + $0x18] sm:$0xff]
  %v22 = vld [vmem:[%s0 + $0x20] sm:$0xff]
  %v23 = vld [vmem:[%s0 + $0x28] sm:$0xff]
  %v24 = vld [vmem:[%s0 + $0x30] sm:$0xff]
  %v25 = vld [vmem:[%s0 + $0x38] sm:$0xff]
  %v26 = vld [vmem:[%s0 + $0x40] sm:$0xff]
  %v27 = vld [vmem:[%s0 + $0x48] sm:$0xff]
  %v28 = vld [vmem:[%s0 + $0x50] sm:$0xff]
  %v29 = vld [vmem:[%s0 + $0x58] sm:$0xff]
  %v30 = vld [vmem:[%s0 + $0x60] sm:$0xff]
  %v31 = vld [vmem:[%s0 + $0x68] sm:$0xff]
  %v32 = vld [vmem:[%s0 + $0x70] sm:$0xff]
  %v33 = vld [vmem:[%s0 + $0x78] sm:$0xff]
  %v34 = vpack.c.bf16 %v19, %v18
  %v35 = vpack.c.bf16 %v21, %v20
  %v36 = vpack.c.bf16 %v23, %v22
  %v37 = vpack.c.bf16 %v25, %v24
  %v38 = vpack.c.bf16 %v27, %v26
  %v39 = vpack.c.bf16 %v29, %v28
  %v40 = vpack.c.bf16 %v31, %v30
  %v41 = vpack.c.bf16 %v33, %v32
  %v42 = vld [vmem:[%s2] sm:$0xf]
  %v43 = vld [vmem:[%s2 + $0x4] sm:$0x3]
  %v44 = vld [vmem:[%s3] sm:$0x1]
  %v45 = vlaneseq
  %v46 = vshrl.u32 %v45, 7
  %v47 = vsub.s32 0, %v46
  %v48 = vrot.slane %v44, %v47
  %v51 = vunpack.c.l.b16 %v42
  %v52 = vunpack.c.l.b16 %v43
  %v53 = vpack.c.b16 %v52, %v51
  %vm54 = vcmask 97280
  %v56 = vsel %vm54, %v34, 0
  %v59 = vsel %vm54, %v35, 0
  %v62 = vsel %vm54, %v36, 0
  %v65 = vsel %vm54, %v37, 0
  %v68 = vsel %vm54, %v38, 0
  %v71 = vsel %vm54, %v39, 0
  %v74 = vsel %vm54, %v40, 0
  %v77 = vsel %vm54, %v41, 0
  %vm79 = vcmask 1045504
  %v81 = vsel %vm79, %v53, 0
  %83 = vmatprep.subr.bf16.mxu0 0
  %84 = vmatpush1.bf16.msra.mxu0 %v81
  %85 = vmatprep.subr.bf16.mxu0 0
  %86 = vmatpush1.bf16.msra.mxu0 0
  %87 = vmatprep.subr.bf16.mxu0 0
  %88 = vmatpush1.bf16.msra.mxu0 0
  %89 = vmatprep.subr.bf16.mxu0 0
  %90 = vmatpush1.bf16.msra.mxu0 0
  %91 = vmatprep.subr.bf16.mxu0 0
  %92 = vmatpush1.bf16.msra.mxu0 0
  %93 = vmatprep.subr.bf16.mxu0 0
  %94 = vmatpush1.bf16.msra.mxu0 0
  %95 = vmatprep.subr.bf16.mxu0 0
  %96 = vmatpush1.bf16.msra.mxu0 0
  %97 = vmatprep.subr.bf16.mxu0 0
  %98 = vmatpush1.bf16.msra.mxu0 0
  %99 = vmatprep.subr.bf16.mxu0 0
  %100 = vmatpush1.bf16.msra.mxu0 0
  %101 = vmatprep.subr.bf16.mxu0 0
  %102 = vmatpush1.bf16.msra.mxu0 0
  %103 = vmatprep.subr.bf16.mxu0 0
  %104 = vmatpush1.bf16.msra.mxu0 0
  %105 = vmatprep.subr.bf16.mxu0 0
  %106 = vmatpush1.bf16.msra.mxu0 0
  %107 = vmatprep.subr.bf16.mxu0 0
  %108 = vmatpush1.bf16.msra.mxu0 0
  %109 = vmatprep.subr.bf16.mxu0 0
  %110 = vmatpush1.bf16.msra.mxu0 0
  %111 = vmatprep.subr.bf16.mxu0 0
  %112 = vmatpush1.bf16.msra.mxu0 0
  %113 = vmatprep.subr.bf16.mxu0 0
  %114 = vmatpush1.bf16.msra.mxu0 0
  %115 = vmatprep.mubr.bf16.mxu0 0
  %116 = vmatmul.mubr.bf16.gmra.mrb[0].mxu0 %v56
  %v117 = vpop.f32.mrb[0].mxu0
  %v118 = vadd.f32 %v48, %v117
  %v119 = vpop.f32.mrb[0].mxu0
  %v120 = vpop.f32.mrb[0].mxu0
  %v121 = vadd.f32 %v48, %v120
  %v122 = vpop.f32.mrb[0].mxu0
  %123 = vmatprep.mubr.bf16.mxu0 0
  %124 = vmatmul.mubr.bf16.gmra.mrb[0].mxu0 %v59
  %v125 = vpop.f32.mrb[0].mxu0
  %v126 = vadd.f32 %v48, %v125
  %v127 = vpop.f32.mrb[0].mxu0
  %v128 = vpop.f32.mrb[0].mxu0
  %v129 = vadd.f32 %v48, %v128
  %v130 = vpop.f32.mrb[0].mxu0
  %131 = vmatprep.mubr.bf16.mxu0 0
  %132 = vmatmul.mubr.bf16.gmra.mrb[0].mxu0 %v62
  %v133 = vpop.f32.mrb[0].mxu0
  %v134 = vadd.f32 %v48, %v133
  %v135 = vpop.f32.mrb[0].mxu0
  %v136 = vpop.f32.mrb[0].mxu0
  %v137 = vadd.f32 %v48, %v136
  %v138 = vpop.f32.mrb[0].mxu0
  %139 = vmatprep.mubr.bf16.mxu0 0
  %140 = vmatmul.mubr.bf16.gmra.mrb[0].mxu0 %v65
  %v141 = vpop.f32.mrb[0].mxu0
  %v142 = vadd.f32 %v48, %v141
  %v143 = vpop.f32.mrb[0].mxu0
  %v144 = vpop.f32.mrb[0].mxu0
  %v145 = vadd.f32 %v48, %v144
  %v146 = vpop.f32.mrb[0].mxu0
  %147 = vmatprep.mubr.bf16.mxu0 0
  %148 = vmatmul.mubr.bf16.gmra.mrb[0].mxu0 %v68
  %v149 = vpop.f32.mrb[0].mxu0
  %v150 = vadd.f32 %v48, %v149
  %v151 = vpop.f32.mrb[0].mxu0
  %v152 = vpop.f32.mrb[0].mxu0
  %v153 = vadd.f32 %v48, %v152
  %v154 = vpop.f32.mrb[0].mxu0
  %155 = vmatprep.mubr.bf16.mxu0 0
  %156 = vmatmul.mubr.bf16.gmra.mrb[0].mxu0 %v71
  %v157 = vpop.f32.mrb[0].mxu0
  %v158 = vadd.f32 %v48, %v157
  %v159 = vpop.f32.mrb[0].mxu0
  %v160 = vpop.f32.mrb[0].mxu0
  %v161 = vadd.f32 %v48, %v160
  %v162 = vpop.f32.mrb[0].mxu0
  %163 = vmatprep.mubr.bf16.mxu0 0
  %164 = vmatmul.mubr.bf16.gmra.mrb[0].mxu0 %v74
  %v165 = vpop.f32.mrb[0].mxu0
  %v166 = vadd.f32 %v48, %v165
  %v167 = vpop.f32.mrb[0].mxu0
  %v168 = vpop.f32.mrb[0].mxu0
  %v169 = vadd.f32 %v48, %v168
  %v170 = vpop.f32.mrb[0].mxu0
  %171 = vmatprep.mubr.bf16.mxu0 0
  %172 = vmatmul.mubr.bf16.gmra.mrb[0].mxu0 %v77
  %v173 = vpop.f32.mrb[0].mxu0
  %v174 = vadd.f32 %v48, %v173
  %v175 = vpop.f32.mrb[0].mxu0
  %v176 = vpop.f32.mrb[0].mxu0
  %v177 = vadd.f32 %v48, %v176
  %v178 = vpop.f32.mrb[0].mxu0
  %179 = vdwg.mxu0
  %v180 = vtanh.pop %v118
  %v181 = vtanh.pop %v121
  %v182 = vtanh.pop %v126
  %v183 = vtanh.pop %v129
  %v184 = vtanh.pop %v134
  %v185 = vtanh.pop %v137
  %v186 = vtanh.pop %v142
  %v187 = vtanh.pop %v145
  %v188 = vtanh.pop %v150
  %v189 = vtanh.pop %v153
  %v190 = vtanh.pop %v158
  %v191 = vtanh.pop %v161
  %v192 = vtanh.pop %v166
  %v193 = vtanh.pop %v169
  %v194 = vtanh.pop %v174
  %v195 = vtanh.pop %v177
  %v196 = vpack.c.bf16 %v181, %v180
  %v197 = vpack.c.bf16 %v183, %v182
  %v198 = vpack.c.bf16 %v185, %v184
  %v199 = vpack.c.bf16 %v187, %v186
  %v200 = vpack.c.bf16 %v189, %v188
  %v201 = vpack.c.bf16 %v191, %v190
  %v202 = vpack.c.bf16 %v193, %v192
  %v203 = vpack.c.bf16 %v195, %v194
  %v204 = vld [vmem:[%s2] sm:$0xf]
  %v205 = vld [vmem:[%s2 + $0x4] sm:$0xf]
  %v206 = vld [vmem:[%s2 + $0x8] sm:$0xf]
  %v207 = vld [vmem:[%s2 + $0xc] sm:$0xf]
  %v208 = vld [vmem:[%s3 + $0x1] sm:$0x1]
  %v209 = vlaneseq
  %v210 = vshrl.u32 %v209, 7
  %v211 = vsub.s32 0, %v210
  %v212 = vrot.slane %v208, %v211
  %v217 = vunpack.c.l.b16 %v204
  %v218 = vunpack.c.l.b16 %v205
  %v219 = vunpack.c.l.b16 %v206
  %v220 = vunpack.c.l.b16 %v207
  %v221 = vpack.c.b16 %v218, %v217
  %v222 = vpack.c.b16 %v220, %v219
  %223 = vrot.lane.b32.xlu0 %v221, 96
  %v224 = vpop.permute.xlu0 %223
  %225 = vrot.lane.b32.xlu0 %v222, 96
  %v226 = vpop.permute.xlu0 %225
  %vm229 = vcmask 261120
  %v231 = vsel %vm229, %v196, 0
  %v234 = vsel %vm229, %v197, 0
  %v237 = vsel %vm229, %v198, 0
  %v240 = vsel %vm229, %v199, 0
  %v243 = vsel %vm229, %v200, 0
  %v246 = vsel %vm229, %v201, 0
  %v249 = vsel %vm229, %v202, 0
  %v252 = vsel %vm229, %v203, 0
  %254 = vmatprep.subr.bf16.mxu0 0
  %255 = vmatpush1.bf16.msra.mxu0 %v224
  %256 = vmatprep.subr.bf16.mxu0 0
  %257 = vmatpush1.bf16.msra.mxu0 %v226
  %258 = vmatprep.subr.bf16.mxu0 0
  %259 = vmatpush1.bf16.msra.mxu0 0
  %260 = vmatprep.subr.bf16.mxu0 0
  %261 = vmatpush1.bf16.msra.mxu0 0
  %262 = vmatprep.subr.bf16.mxu0 0
  %263 = vmatpush1.bf16.msra.mxu0 0
  %264 = vmatprep.subr.bf16.mxu0 0
  %265 = vmatpush1.bf16.msra.mxu0 0
  %266 = vmatprep.subr.bf16.mxu0 0
  %267 = vmatpush1.bf16.msra.mxu0 0
  %268 = vmatprep.subr.bf16.mxu0 0
  %269 = vmatpush1.bf16.msra.mxu0 0
  %270 = vmatprep.subr.bf16.mxu0 0
  %271 = vmatpush1.bf16.msra.mxu0 0
  %272 = vmatprep.subr.bf16.mxu0 0
  %273 = vmatpush1.bf16.msra.mxu0 0
  %274 = vmatprep.subr.bf16.mxu0 0
  %275 = vmatpush1.bf16.msra.mxu0 0
  %276 = vmatprep.subr.bf16.mxu0 0
  %277 = vmatpush1.bf16.msra.mxu0 0
  %278 = vmatprep.subr.bf16.mxu0 0
  %279 = vmatpush1.bf16.msra.mxu0 0
  %280 = vmatprep.subr.bf16.mxu0 0
  %281 = vmatpush1.bf16.msra.mxu0 0
  %282 = vmatprep.subr.bf16.mxu0 0
  %283 = vmatpush1.bf16.msra.mxu0 0
  %284 = vmatprep.subr.bf16.mxu0 0
  %285 = vmatpush1.bf16.msra.mxu0 0
  %286 = vmatprep.mubr.bf16.mxu0 0
  %287 = vmatmul.mubr.bf16.gmra.mrb[0].mxu0 %v231
  %v288 = vpop.f32.mrb[0].mxu0
  %v289 = vadd.f32 %v212, %v288
  %v290 = vpop.f32.mrb[0].mxu0
  %v291 = vpop.f32.mrb[0].mxu0
  %v292 = vadd.f32 %v212, %v291
  %v293 = vpop.f32.mrb[0].mxu0
  %294 = vmatprep.mubr.bf16.mxu0 0
  %295 = vmatmul.mubr.bf16.gmra.mrb[0].mxu0 %v234
  %v296 = vpop.f32.mrb[0].mxu0
  %v297 = vadd.f32 %v212, %v296
  %v298 = vpop.f32.mrb[0].mxu0
  %v299 = vpop.f32.mrb[0].mxu0
  %v300 = vadd.f32 %v212, %v299
  %v301 = vpop.f32.mrb[0].mxu0
  %302 = vmatprep.mubr.bf16.mxu0 0
  %303 = vmatmul.mubr.bf16.gmra.mrb[0].mxu0 %v237
  %v304 = vpop.f32.mrb[0].mxu0
  %v305 = vadd.f32 %v212, %v304
  %v306 = vpop.f32.mrb[0].mxu0
  %v307 = vpop.f32.mrb[0].mxu0
  %v308 = vadd.f32 %v212, %v307
  %v309 = vpop.f32.mrb[0].mxu0
  %310 = vmatprep.mubr.bf16.mxu0 0
  %311 = vmatmul.mubr.bf16.gmra.mrb[0].mxu0 %v240
  %v312 = vpop.f32.mrb[0].mxu0
  %v313 = vadd.f32 %v212, %v312
  %v314 = vpop.f32.mrb[0].mxu0
  %v315 = vpop.f32.mrb[0].mxu0
  %v316 = vadd.f32 %v212, %v315
  %v317 = vpop.f32.mrb[0].mxu0
  %318 = vmatprep.mubr.bf16.mxu0 0
  %319 = vmatmul.mubr.bf16.gmra.mrb[0].mxu0 %v243
  %v320 = vpop.f32.mrb[0].mxu0
  %v321 = vadd.f32 %v212, %v320
  %v322 = vpop.f32.mrb[0].mxu0
  %v323 = vpop.f32.mrb[0].mxu0
  %v324 = vadd.f32 %v212, %v323
  %v325 = vpop.f32.mrb[0].mxu0
  %326 = vmatprep.mubr.bf16.mxu0 0
  %327 = vmatmul.mubr.bf16.gmra.mrb[0].mxu0 %v246
  %v328 = vpop.f32.mrb[0].mxu0
  %v329 = vadd.f32 %v212, %v328
  %v330 = vpop.f32.mrb[0].mxu0
  %v331 = vpop.f32.mrb[0].mxu0
  %v332 = vadd.f32 %v212, %v331
  %v333 = vpop.f32.mrb[0].mxu0
  %334 = vmatprep.mubr.bf16.mxu0 0
  %335 = vmatmul.mubr.bf16.gmra.mrb[0].mxu0 %v249
  %v336 = vpop.f32.mrb[0].mxu0
  %v337 = vadd.f32 %v212, %v336
  %v338 = vpop.f32.mrb[0].mxu0
  %v339 = vpop.f32.mrb[0].mxu0
  %v340 = vadd.f32 %v212, %v339
  %v341 = vpop.f32.mrb[0].mxu0
  %342 = vmatprep.mubr.bf16.mxu0 0
  %343 = vmatmul.mubr.bf16.gmra.mrb[0].mxu0 %v252
  %v344 = vpop.f32.mrb[0].mxu0
  %v345 = vadd.f32 %v212, %v344
  %v346 = vpop.f32.mrb[0].mxu0
  %v347 = vpop.f32.mrb[0].mxu0
  %v348 = vadd.f32 %v212, %v347
  %v349 = vpop.f32.mrb[0].mxu0
  %350 = vdwg.mxu0
  %v351 = vtanh.pop %v289
  %v352 = vtanh.pop %v292
  %v353 = vtanh.pop %v297
  %v354 = vtanh.pop %v300
  %v355 = vtanh.pop %v305
  %v356 = vtanh.pop %v308
  %v357 = vtanh.pop %v313
  %v358 = vtanh.pop %v316
  %v359 = vtanh.pop %v321
  %v360 = vtanh.pop %v324
  %v361 = vtanh.pop %v329
  %v362 = vtanh.pop %v332
  %v363 = vtanh.pop %v337
  %v364 = vtanh.pop %v340
  %v365 = vtanh.pop %v345
  %v366 = vtanh.pop %v348
  %374 = vrot.lane.b32.xlu0 %v352, 32
  %v375 = vpop.permute.xlu0 %374
  %376 = vrot.lane.b32.xlu0 %v354, 32
  %v377 = vpop.permute.xlu0 %376
  %378 = vrot.lane.b32.xlu0 %v356, 32
  %v379 = vpop.permute.xlu0 %378
  %380 = vrot.lane.b32.xlu0 %v358, 32
  %v381 = vpop.permute.xlu0 %380
  %382 = vrot.lane.b32.xlu0 %v360, 32
  %v383 = vpop.permute.xlu0 %382
  %384 = vrot.lane.b32.xlu0 %v362, 32
  %v385 = vpop.permute.xlu0 %384
  %386 = vrot.lane.b32.xlu0 %v364, 32
  %v387 = vpop.permute.xlu0 %386
  %402 = vrot.lane.b32.xlu0 %v353, 64
  %v403 = vpop.permute.xlu0 %402
  %404 = vrot.lane.b32.xlu0 %v355, 64
  %v405 = vpop.permute.xlu0 %404
  %406 = vrot.lane.b32.xlu0 %v357, 64
  %v407 = vpop.permute.xlu0 %406
  %408 = vrot.lane.b32.xlu0 %v359, 64
  %v409 = vpop.permute.xlu0 %408
  %410 = vrot.lane.b32.xlu0 %v361, 64
  %v411 = vpop.permute.xlu0 %410
  %412 = vrot.lane.b32.xlu0 %v363, 64
  %v413 = vpop.permute.xlu0 %412
  %414 = vrot.lane.b32.xlu0 %v365, 64
  %v415 = vpop.permute.xlu0 %414
  %424 = vrot.lane.b32.xlu0 %v354, 96
  %v425 = vpop.permute.xlu0 %424
  %426 = vrot.lane.b32.xlu0 %v356, 96
  %v427 = vpop.permute.xlu0 %426
  %428 = vrot.lane.b32.xlu0 %v358, 96
  %v429 = vpop.permute.xlu0 %428
  %430 = vrot.lane.b32.xlu0 %v360, 96
  %v431 = vpop.permute.xlu0 %430
  %432 = vrot.lane.b32.xlu0 %v362, 96
  %v433 = vpop.permute.xlu0 %432
  %434 = vrot.lane.b32.xlu0 %v364, 96
  %v435 = vpop.permute.xlu0 %434
  %436 = vrot.lane.b32.xlu0 %v366, 96
  %v437 = vpop.permute.xlu0 %436
  %v445 = vsel %vm229, %v351, %v375
  %v446 = vsel %vm229, %v353, %v377
  %v447 = vsel %vm229, %v355, %v379
  %v448 = vsel %vm229, %v357, %v381
  %v449 = vsel %vm229, %v359, %v383
  %v450 = vsel %vm229, %v361, %v385
  %v451 = vsel %vm229, %v363, %v387
  %vm452 = vcmask 523264
  %v453 = vsel %vm452, %v445, %v403
  %v454 = vsel %vm452, %v446, %v405
  %v455 = vsel %vm452, %v447, %v407
  %v456 = vsel %vm452, %v448, %v409
  %v457 = vsel %vm452, %v449, %v411
  %v458 = vsel %vm452, %v450, %v413
  %v459 = vsel %vm452, %v451, %v415
  %vm460 = vcmask 785408
  %v461 = vsel %vm460, %v453, %v425
  %v462 = vsel %vm460, %v454, %v427
  %v463 = vsel %vm460, %v455, %v429
  %v464 = vsel %vm460, %v456, %v431
  %v465 = vsel %vm460, %v457, %v433
  %v466 = vsel %vm460, %v458, %v435
  %v467 = vsel %vm460, %v459, %v437
  %v468 = vpack.c.bf16 %v462, %v461
  %v469 = vpack.c.bf16 %v464, %v463
  %v470 = vpack.c.bf16 %v466, %v465
  %v471 = vpack.c.bf16 %v467, %v467
  %v472 = vld [vmem:[%s2 + $0x10] sm:$0xf]
  %v473 = vld [vmem:[%s2 + $0x14] sm:$0xf]
  %v474 = vld [vmem:[%s2 + $0x18] sm:$0xf]
  %v475 = vld [vmem:[%s2 + $0x1c] sm:$0xf]
  %v476 = vld [vmem:[%s2 + $0x20] sm:$0xf]
  %v477 = vld [vmem:[%s2 + $0x24] sm:$0xf]
  %v478 = vld [vmem:[%s2 + $0x28] sm:$0xf]
  %v479 = vld [vmem:[%s2 + $0x2c] sm:$0xf]
  %v480 = vld [vmem:[%s2 + $0x30] sm:$0xf]
  %v481 = vld [vmem:[%s2 + $0x34] sm:$0xf]
  %v482 = vld [vmem:[%s2 + $0x38] sm:$0xf]
  %v483 = vld [vmem:[%s2 + $0x3c] sm:$0xf]
  %v484 = vld [vmem:[%s2 + $0x40] sm:$0xf]
  %v485 = vld [vmem:[%s2 + $0x44] sm:$0xf]
  %v486 = vld [vmem:[%s2 + $0x48] sm:$0xf]
  %v487 = vld [vmem:[%s2 + $0x4c] sm:$0xf]
  %v488 = vld [vmem:[%s3 + $0x2] sm:$0x1]
  %v489 = vlaneseq
  %v490 = vshrl.u32 %v489, 7
  %v491 = vsub.s32 0, %v490
  %v492 = vrot.slane %v488, %v491
  %v509 = vunpack.c.l.b16 %v472
  %v510 = vunpack.c.l.b16 %v473
  %v511 = vunpack.c.l.b16 %v474
  %v512 = vunpack.c.l.b16 %v475
  %v513 = vunpack.c.l.b16 %v476
  %v514 = vunpack.c.l.b16 %v477
  %v515 = vunpack.c.l.b16 %v478
  %v516 = vunpack.c.l.b16 %v479
  %v517 = vunpack.c.l.b16 %v480
  %v518 = vunpack.c.l.b16 %v481
  %v519 = vunpack.c.l.b16 %v482
  %v520 = vunpack.c.l.b16 %v483
  %v521 = vunpack.c.l.b16 %v484
  %v522 = vunpack.c.l.b16 %v485
  %v523 = vunpack.c.l.b16 %v486
  %v524 = vunpack.c.l.b16 %v487
  %v525 = vpack.c.b16 %v510, %v509
  %v526 = vpack.c.b16 %v512, %v511
  %v527 = vpack.c.b16 %v514, %v513
  %v528 = vpack.c.b16 %v516, %v515
  %v529 = vpack.c.b16 %v518, %v517
  %v530 = vpack.c.b16 %v520, %v519
  %v531 = vpack.c.b16 %v522, %v521
  %v532 = vpack.c.b16 %v524, %v523
  %541 = vmatprep.subr.bf16.mxu0 0
  %542 = vmatpush1.bf16.msra.mxu0 %v525
  %543 = vmatprep.subr.bf16.mxu0 0
  %544 = vmatpush1.bf16.msra.mxu0 %v526
  %545 = vmatprep.subr.bf16.mxu0 0
  %546 = vmatpush1.bf16.msra.mxu0 %v527
  %547 = vmatprep.subr.bf16.mxu0 0
  %548 = vmatpush1.bf16.msra.mxu0 %v528
  %549 = vmatprep.subr.bf16.mxu0 0
  %550 = vmatpush1.bf16.msra.mxu0 %v529
  %551 = vmatprep.subr.bf16.mxu0 0
  %552 = vmatpush1.bf16.msra.mxu0 %v530
  %553 = vmatprep.subr.bf16.mxu0 0
  %554 = vmatpush1.bf16.msra.mxu0 %v531
  %555 = vmatprep.subr.bf16.mxu0 0
  %556 = vmatpush1.bf16.msra.mxu0 %v532
  %557 = vmatprep.subr.bf16.mxu0 0
  %558 = vmatpush1.bf16.msra.mxu0 0
  %559 = vmatprep.subr.bf16.mxu0 0
  %560 = vmatpush1.bf16.msra.mxu0 0
  %561 = vmatprep.subr.bf16.mxu0 0
  %562 = vmatpush1.bf16.msra.mxu0 0
  %563 = vmatprep.subr.bf16.mxu0 0
  %564 = vmatpush1.bf16.msra.mxu0 0
  %565 = vmatprep.subr.bf16.mxu0 0
  %566 = vmatpush1.bf16.msra.mxu0 0
  %567 = vmatprep.subr.bf16.mxu0 0
  %568 = vmatpush1.bf16.msra.mxu0 0
  %569 = vmatprep.subr.bf16.mxu0 0
  %570 = vmatpush1.bf16.msra.mxu0 0
  %571 = vmatprep.subr.bf16.mxu0 0
  %572 = vmatpush1.bf16.msra.mxu0 0
  %573 = vmatprep.mubr.bf16.mxu0 0
  %574 = vmatmul.mubr.bf16.gmra.mrb[0].mxu0 %v468
  %v575 = vpop.f32.mrb[0].mxu0
  %v576 = vadd.f32 %v492, %v575
  %v577 = vpop.f32.mrb[0].mxu0
  %v578 = vpop.f32.mrb[0].mxu0
  %v579 = vadd.f32 %v492, %v578
  %v580 = vpop.f32.mrb[0].mxu0
  %581 = vmatprep.mubr.bf16.mxu0 0
  %582 = vmatmul.mubr.bf16.gmra.mrb[0].mxu0 %v469
  %v583 = vpop.f32.mrb[0].mxu0
  %v584 = vadd.f32 %v492, %v583
  %v585 = vpop.f32.mrb[0].mxu0
  %v586 = vpop.f32.mrb[0].mxu0
  %v587 = vadd.f32 %v492, %v586
  %v588 = vpop.f32.mrb[0].mxu0
  %589 = vmatprep.mubr.bf16.mxu0 0
  %590 = vmatmul.mubr.bf16.gmra.mrb[0].mxu0 %v470
  %v591 = vpop.f32.mrb[0].mxu0
  %v592 = vadd.f32 %v492, %v591
  %v593 = vpop.f32.mrb[0].mxu0
  %v594 = vpop.f32.mrb[0].mxu0
  %v595 = vadd.f32 %v492, %v594
  %v596 = vpop.f32.mrb[0].mxu0
  %597 = vmatprep.mubr.bf16.mxu0 0
  %598 = vmatmul.mubr.bf16.gmra.mrb[0].mxu0 %v471
  %v599 = vpop.f32.mrb[0].mxu0
  %v600 = vadd.f32 %v492, %v599
  %v601 = vpop.f32.mrb[0].mxu0
  %v602 = vpop.f32.mrb[0].mxu0
  %v603 = vpop.f32.mrb[0].mxu0
  %604 = vdwg.mxu0
  %v605 = vtanh.pop %v576
  %v606 = vtanh.pop %v579
  %v607 = vtanh.pop %v584
  %v608 = vtanh.pop %v587
  %v609 = vtanh.pop %v592
  %v610 = vtanh.pop %v595
  %v611 = vtanh.pop %v600
  %617 = vrot.lane.b32.xlu0 %v606, 16
  %v618 = vpop.permute.xlu0 %617
  %619 = vrot.lane.b32.xlu0 %v607, 16
  %v620 = vpop.permute.xlu0 %619
  %621 = vrot.lane.b32.xlu0 %v608, 16
  %v622 = vpop.permute.xlu0 %621
  %623 = vrot.lane.b32.xlu0 %v609, 16
  %v624 = vpop.permute.xlu0 %623
  %625 = vrot.lane.b32.xlu0 %v610, 16
  %v626 = vpop.permute.xlu0 %625
  %633 = vrot.lane.b32.xlu0 %v607, 32
  %v634 = vpop.permute.xlu0 %633
  %635 = vrot.lane.b32.xlu0 %v608, 32
  %v636 = vpop.permute.xlu0 %635
  %637 = vrot.lane.b32.xlu0 %v609, 32
  %v638 = vpop.permute.xlu0 %637
  %639 = vrot.lane.b32.xlu0 %v610, 32
  %v640 = vpop.permute.xlu0 %639
  %641 = vrot.lane.b32.xlu0 %v611, 32
  %v642 = vpop.permute.xlu0 %641
  %vm648 = vcmask 130048
  %v649 = vsel %vm648, %v605, %v618
  %v650 = vsel %vm648, %v606, %v620
  %v651 = vsel %vm648, %v607, %v622
  %v652 = vsel %vm648, %v608, %v624
  %v653 = vsel %vm648, %v609, %v626
  %v654 = vsel %vm229, %v649, %v634
  %v655 = vsel %vm229, %v650, %v636
  %v656 = vsel %vm229, %v651, %v638
  %v657 = vsel %vm229, %v652, %v640
  %v658 = vsel %vm229, %v653, %v642
  %v659 = vpack.c.bf16 %v655, %v654
  %v660 = vpack.c.bf16 %v657, %v656
  %v661 = vpack.c.bf16 %v658, %v658
  %v662 = vld [vmem:[%s2 + $0x10] sm:$0xf]
  %v663 = vld [vmem:[%s2 + $0x14] sm:$0xf]
  %v664 = vld [vmem:[%s2 + $0x18] sm:$0xf]
  %v665 = vld [vmem:[%s2 + $0x1c] sm:$0xf]
  %v666 = vld [vmem:[%s2 + $0x20] sm:$0xf]
  %v667 = vld [vmem:[%s2 + $0x24] sm:$0xf]
  %v668 = vld [vmem:[%s3 + $0x3] sm:$0x1]
  %v669 = vlaneseq
  %v670 = vshrl.u32 %v669, 7
  %v671 = vsub.s32 0, %v670
  %v672 = vrot.slane %v668, %v671
  %v679 = vunpack.c.l.b16 %v662
  %v680 = vunpack.c.l.b16 %v663
  %v681 = vunpack.c.l.b16 %v664
  %v682 = vunpack.c.l.b16 %v665
  %v683 = vunpack.c.l.b16 %v666
  %v684 = vunpack.c.l.b16 %v667
  %v685 = vpack.c.b16 %v680, %v679
  %v686 = vpack.c.b16 %v682, %v681
  %v687 = vpack.c.b16 %v684, %v683
  %688 = vrot.lane.b32.xlu0 %v685, 112
  %v689 = vpop.permute.xlu0 %688
  %690 = vrot.lane.b32.xlu0 %v686, 112
  %v691 = vpop.permute.xlu0 %690
  %692 = vrot.lane.b32.xlu0 %v687, 112
  %v693 = vpop.permute.xlu0 %692
  %vm697 = vcmask 392192
  %v699 = vsel %vm697, %v659, 0
  %v702 = vsel %vm697, %v660, 0
  %v705 = vsel %vm697, %v661, 0
  %707 = vmatprep.subr.bf16.mxu0 0
  %708 = vmatpush1.bf16.msra.mxu0 %v689
  %709 = vmatprep.subr.bf16.mxu0 0
  %710 = vmatpush1.bf16.msra.mxu0 %v691
  %711 = vmatprep.subr.bf16.mxu0 0
  %712 = vmatpush1.bf16.msra.mxu0 %v693
  %713 = vmatprep.subr.bf16.mxu0 0
  %714 = vmatpush1.bf16.msra.mxu0 0
  %715 = vmatprep.subr.bf16.mxu0 0
  %716 = vmatpush1.bf16.msra.mxu0 0
  %717 = vmatprep.subr.bf16.mxu0 0
  %718 = vmatpush1.bf16.msra.mxu0 0
  %719 = vmatprep.subr.bf16.mxu0 0
  %720 = vmatpush1.bf16.msra.mxu0 0
  %721 = vmatprep.subr.bf16.mxu0 0
  %722 = vmatpush1.bf16.msra.mxu0 0
  %723 = vmatprep.subr.bf16.mxu0 0
  %724 = vmatpush1.bf16.msra.mxu0 0
  %725 = vmatprep.subr.bf16.mxu0 0
  %726 = vmatpush1.bf16.msra.mxu0 0
  %727 = vmatprep.subr.bf16.mxu0 0
  %728 = vmatpush1.bf16.msra.mxu0 0
  %729 = vmatprep.subr.bf16.mxu0 0
  %730 = vmatpush1.bf16.msra.mxu0 0
  %731 = vmatprep.subr.bf16.mxu0 0
  %732 = vmatpush1.bf16.msra.mxu0 0
  %733 = vmatprep.subr.bf16.mxu0 0
  %734 = vmatpush1.bf16.msra.mxu0 0
  %735 = vmatprep.subr.bf16.mxu0 0
  %736 = vmatpush1.bf16.msra.mxu0 0
  %737 = vmatprep.subr.bf16.mxu0 0
  %738 = vmatpush1.bf16.msra.mxu0 0
  %739 = vmatprep.mubr.bf16.mxu0 0
  %740 = vmatmul.mubr.bf16.gmra.mrb[0].mxu0 %v699
  %v741 = vpop.f32.mrb[0].mxu0
  %v742 = vadd.f32 %v672, %v741
  %v743 = vpop.f32.mrb[0].mxu0
  %v744 = vpop.f32.mrb[0].mxu0
  %v745 = vadd.f32 %v672, %v744
  %v746 = vpop.f32.mrb[0].mxu0
  %747 = vmatprep.mubr.bf16.mxu0 0
  %748 = vmatmul.mubr.bf16.gmra.mrb[0].mxu0 %v702
  %v749 = vpop.f32.mrb[0].mxu0
  %v750 = vadd.f32 %v672, %v749
  %v751 = vpop.f32.mrb[0].mxu0
  %v752 = vpop.f32.mrb[0].mxu0
  %v753 = vadd.f32 %v672, %v752
  %v754 = vpop.f32.mrb[0].mxu0
  %755 = vmatprep.mubr.bf16.mxu0 0
  %756 = vmatmul.mubr.bf16.gmra.mrb[0].mxu0 %v705
  %v757 = vpop.f32.mrb[0].mxu0
  %v758 = vadd.f32 %v672, %v757
  %v759 = vpop.f32.mrb[0].mxu0
  %v760 = vpop.f32.mrb[0].mxu0
  %v761 = vpop.f32.mrb[0].mxu0
  %762 = vdwg.mxu0
  %v763 = vtanh.pop %v742
  %v764 = vtanh.pop %v745
  %v765 = vtanh.pop %v750
  %v766 = vtanh.pop %v753
  %v767 = vtanh.pop %v758
  %769 = vrot.lane.b32.xlu0 %v764, 16
  %v770 = vpop.permute.xlu0 %769
  %773 = vrot.lane.b32.xlu0 %v765, 32
  %v774 = vpop.permute.xlu0 %773
  %777 = vrot.lane.b32.xlu0 %v766, 48
  %v778 = vpop.permute.xlu0 %777
  %781 = vrot.lane.b32.xlu0 %v767, 64
  %v782 = vpop.permute.xlu0 %781
  %v784 = vsel %vm648, %v763, %v770
  %v785 = vsel %vm229, %v784, %v774
  %v786 = vsel %vm697, %v785, %v778
  %v787 = vsel %vm452, %v786, %v782
  %v788 = vpack.c.bf16 %v787, %v787
  %v789 = vld [vmem:[%s2 + $0x10] sm:$0xf]
  %v790 = vld [vmem:[%s2 + $0x14] sm:$0xf]
  %v791 = vld [vmem:[%s2 + $0x18] sm:$0xf]
  %v792 = vld [vmem:[%s2 + $0x1c] sm:$0xf]
  %v793 = vld [vmem:[%s2 + $0x20] sm:$0xf]
  %v794 = vld [vmem:[%s2 + $0x24] sm:$0xf]
  %v795 = vld [vmem:[%s2 + $0x28] sm:$0xf]
  %v796 = vld [vmem:[%s2 + $0x2c] sm:$0xf]
  %v797 = vld [vmem:[%s2 + $0x30] sm:$0xf]
  %v798 = vld [vmem:[%s2 + $0x34] sm:$0xf]
  %v799 = vld [vmem:[%s3 + $0x4] sm:$0x1]
  %v800 = vlaneseq
  %v801 = vshrl.u32 %v800, 7
  %v802 = vsub.s32 0, %v801
  %v803 = vrot.slane %v799, %v802
  %v814 = vunpack.c.l.b16 %v789
  %v815 = vunpack.c.l.b16 %v790
  %v816 = vunpack.c.l.b16 %v791
  %v817 = vunpack.c.l.b16 %v792
  %v818 = vunpack.c.l.b16 %v793
  %v819 = vunpack.c.l.b16 %v794
  %v820 = vunpack.c.l.b16 %v795
  %v821 = vunpack.c.l.b16 %v796
  %v822 = vunpack.c.l.b16 %v797
  %v823 = vunpack.c.l.b16 %v798
  %v824 = vpack.c.b16 %v815, %v814
  %v825 = vpack.c.b16 %v817, %v816
  %v826 = vpack.c.b16 %v819, %v818
  %v827 = vpack.c.b16 %v821, %v820
  %v828 = vpack.c.b16 %v823, %v822
  %829 = vrot.lane.b32.xlu0 %v824, 96
  %v830 = vpop.permute.xlu0 %829
  %831 = vrot.lane.b32.xlu0 %v825, 96
  %v832 = vpop.permute.xlu0 %831
  %833 = vrot.lane.b32.xlu0 %v826, 96
  %v834 = vpop.permute.xlu0 %833
  %835 = vrot.lane.b32.xlu0 %v827, 96
  %v836 = vpop.permute.xlu0 %835
  %837 = vrot.lane.b32.xlu0 %v828, 96
  %v838 = vpop.permute.xlu0 %837
  %vm844 = vcmask 654336
  %v846 = vsel %vm844, %v788, 0
  %848 = vmatprep.subr.bf16.mxu0 0
  %849 = vmatpush1.bf16.msra.mxu0 %v830
  %850 = vmatprep.subr.bf16.mxu0 0
  %851 = vmatpush1.bf16.msra.mxu0 %v832
  %852 = vmatprep.subr.bf16.mxu0 0
  %853 = vmatpush1.bf16.msra.mxu0 %v834
  %854 = vmatprep.subr.bf16.mxu0 0
  %855 = vmatpush1.bf16.msra.mxu0 %v836
  %856 = vmatprep.subr.bf16.mxu0 0
  %857 = vmatpush1.bf16.msra.mxu0 %v838
  %858 = vmatprep.subr.bf16.mxu0 0
  %859 = vmatpush1.bf16.msra.mxu0 0
  %860 = vmatprep.subr.bf16.mxu0 0
  %861 = vmatpush1.bf16.msra.mxu0 0
  %862 = vmatprep.subr.bf16.mxu0 0
  %863 = vmatpush1.bf16.msra.mxu0 0
  %864 = vmatprep.subr.bf16.mxu0 0
  %865 = vmatpush1.bf16.msra.mxu0 0
  %866 = vmatprep.subr.bf16.mxu0 0
  %867 = vmatpush1.bf16.msra.mxu0 0
  %868 = vmatprep.subr.bf16.mxu0 0
  %869 = vmatpush1.bf16.msra.mxu0 0
  %870 = vmatprep.subr.bf16.mxu0 0
  %871 = vmatpush1.bf16.msra.mxu0 0
  %872 = vmatprep.subr.bf16.mxu0 0
  %873 = vmatpush1.bf16.msra.mxu0 0
  %874 = vmatprep.subr.bf16.mxu0 0
  %875 = vmatpush1.bf16.msra.mxu0 0
  %876 = vmatprep.subr.bf16.mxu0 0
  %877 = vmatpush1.bf16.msra.mxu0 0
  %878 = vmatprep.subr.bf16.mxu0 0
  %879 = vmatpush1.bf16.msra.mxu0 0
  %880 = vmatprep.mubr.bf16.mxu0 0
  %881 = vmatmul.mubr.bf16.gmra.mrb[0].mxu0 %v846
  %v882 = vpop.f32.mrb[0].mxu0
  %v883 = vadd.f32 %v803, %v882
  %v884 = vpop.f32.mrb[0].mxu0
  %v885 = vpop.f32.mrb[0].mxu0
  %v886 = vpop.f32.mrb[0].mxu0
  %887 = vdwg.mxu0
  %v888 = vld [vmem:[%s1] sm:$0xff]
  %890 = vrot.lane.b32.xlu0 %v883, 16
  %v891 = vpop.permute.xlu0 %890
  %v893 = vsel %vm648, %v888, %v891
  %v894 = vpack.c.bf16 %v893, %v893
  %v895 = vld [vmem:[%s3 + $0x5] sm:$0x1]
  %v896 = vlaneseq
  %v897 = vshrl.u32 %v896, 7
  %v898 = vsub.s32 0, %v897
  %v899 = vrot.slane %v895, %v898
  %900 = vrot.lane.b32.xlu0 %v221, 64
  %v901 = vpop.permute.xlu0 %900
  %902 = vrot.lane.b32.xlu0 %v222, 64
  %v903 = vpop.permute.xlu0 %902
  %v907 = vsel %vm229, %v894, 0
  %909 = vmatprep.subr.bf16.mxu0 0
  %910 = vmatpush1.bf16.msra.mxu0 %v901
  %911 = vmatprep.subr.bf16.mxu0 0
  %912 = vmatpush1.bf16.msra.mxu0 %v903
  %913 = vmatprep.subr.bf16.mxu0 0
  %914 = vmatpush1.bf16.msra.mxu0 0
  %915 = vmatprep.subr.bf16.mxu0 0
  %916 = vmatpush1.bf16.msra.mxu0 0
  %917 = vmatprep.subr.bf16.mxu0 0
  %918 = vmatpush1.bf16.msra.mxu0 0
  %919 = vmatprep.subr.bf16.mxu0 0
  %920 = vmatpush1.bf16.msra.mxu0 0
  %921 = vmatprep.subr.bf16.mxu0 0
  %922 = vmatpush1.bf16.msra.mxu0 0
  %923 = vmatprep.subr.bf16.mxu0 0
  %924 = vmatpush1.bf16.msra.mxu0 0
  %925 = vmatprep.subr.bf16.mxu0 0
  %926 = vmatpush1.bf16.msra.mxu0 0
  %927 = vmatprep.subr.bf16.mxu0 0
  %928 = vmatpush1.bf16.msra.mxu0 0
  %929 = vmatprep.subr.bf16.mxu0 0
  %930 = vmatpush1.bf16.msra.mxu0 0
  %931 = vmatprep.subr.bf16.mxu0 0
  %932 = vmatpush1.bf16.msra.mxu0 0
  %933 = vmatprep.subr.bf16.mxu0 0
  %934 = vmatpush1.bf16.msra.mxu0 0
  %935 = vmatprep.subr.bf16.mxu0 0
  %936 = vmatpush1.bf16.msra.mxu0 0
  %937 = vmatprep.subr.bf16.mxu0 0
  %938 = vmatpush1.bf16.msra.mxu0 0
  %939 = vmatprep.subr.bf16.mxu0 0
  %940 = vmatpush1.bf16.msra.mxu0 0
  %941 = vmatprep.mubr.bf16.mxu0 0
  %942 = vmatmul.mubr.bf16.gmra.mrb[0].mxu0 %v907
  %v943 = vpop.f32.mrb[0].mxu0
  %v944 = vadd.f32 %v899, %v943
  %v945 = vpop.f32.mrb[0].mxu0
  %v946 = vpop.f32.mrb[0].mxu0
  %v947 = vpop.f32.mrb[0].mxu0
  %948 = vdwg.mxu0
  %v949 = vtanh.pop %v944
  %v950 = vpack.c.bf16 %v949, %v949
  %v951 = vld [vmem:[%s3 + $0x6] sm:$0x1]
  %v952 = vlaneseq
  %v953 = vshrl.u32 %v952, 7
  %v954 = vsub.s32 0, %v953
  %v955 = vrot.slane %v951, %v954
  %956 = vrot.lane.b32.xlu0 %v221, 32
  %v957 = vpop.permute.xlu0 %956
  %958 = vrot.lane.b32.xlu0 %v222, 32
  %v959 = vpop.permute.xlu0 %958
  %v963 = vsel %vm229, %v950, 0
  %965 = vmatprep.subr.bf16.mxu0 0
  %966 = vmatpush1.bf16.msra.mxu0 %v957
  %967 = vmatprep.subr.bf16.mxu0 0
  %968 = vmatpush1.bf16.msra.mxu0 %v959
  %969 = vmatprep.subr.bf16.mxu0 0
  %970 = vmatpush1.bf16.msra.mxu0 0
  %971 = vmatprep.subr.bf16.mxu0 0
  %972 = vmatpush1.bf16.msra.mxu0 0
  %973 = vmatprep.subr.bf16.mxu0 0
  %974 = vmatpush1.bf16.msra.mxu0 0
  %975 = vmatprep.subr.bf16.mxu0 0
  %976 = vmatpush1.bf16.msra.mxu0 0
  %977 = vmatprep.subr.bf16.mxu0 0
  %978 = vmatpush1.bf16.msra.mxu0 0
  %979 = vmatprep.subr.bf16.mxu0 0
  %980 = vmatpush1.bf16.msra.mxu0 0
  %981 = vmatprep.subr.bf16.mxu0 0
  %982 = vmatpush1.bf16.msra.mxu0 0
  %983 = vmatprep.subr.bf16.mxu0 0
  %984 = vmatpush1.bf16.msra.mxu0 0
  %985 = vmatprep.subr.bf16.mxu0 0
  %986 = vmatpush1.bf16.msra.mxu0 0
  %987 = vmatprep.subr.bf16.mxu0 0
  %988 = vmatpush1.bf16.msra.mxu0 0
  %989 = vmatprep.subr.bf16.mxu0 0
  %990 = vmatpush1.bf16.msra.mxu0 0
  %991 = vmatprep.subr.bf16.mxu0 0
  %992 = vmatpush1.bf16.msra.mxu0 0
  %993 = vmatprep.subr.bf16.mxu0 0
  %994 = vmatpush1.bf16.msra.mxu0 0
  %995 = vmatprep.subr.bf16.mxu0 0
  %996 = vmatpush1.bf16.msra.mxu0 0
  %997 = vmatprep.mubr.bf16.mxu0 0
  %998 = vmatmul.mubr.bf16.gmra.mrb[0].mxu0 %v963
  %v999 = vpop.f32.mrb[0].mxu0
  %v1000 = vadd.f32 %v955, %v999
  %v1001 = vpop.f32.mrb[0].mxu0
  %v1002 = vpop.f32.mrb[0].mxu0
  %v1003 = vpop.f32.mrb[0].mxu0
  %1004 = vdwg.mxu0
  %v1005 = vtanh.pop %v1000
  %v1006 = vpack.c.bf16 %v1005, %v1005
  %v1007 = vld [vmem:[%s2 + $0x10] sm:$0xf]
  %v1008 = vld [vmem:[%s2 + $0x14] sm:$0xf]
  %v1009 = vld [vmem:[%s2 + $0x18] sm:$0xf]
  %v1010 = vld [vmem:[%s2 + $0x1c] sm:$0xf]
  %v1011 = vld [vmem:[%s3 + $0x7] sm:$0x1]
  %v1012 = vlaneseq
  %v1013 = vshrl.u32 %v1012, 7
  %v1014 = vsub.s32 0, %v1013
  %v1015 = vrot.slane %v1011, %v1014
  %v1020 = vunpack.c.l.b16 %v1007
  %v1021 = vunpack.c.l.b16 %v1008
  %v1022 = vunpack.c.l.b16 %v1009
  %v1023 = vunpack.c.l.b16 %v1010
  %v1024 = vpack.c.b16 %v1021, %v1020
  %v1025 = vpack.c.b16 %v1023, %v1022
  %1026 = vrot.lane.b32.xlu0 %v1024, 80
  %v1027 = vpop.permute.xlu0 %1026
  %1028 = vrot.lane.b32.xlu0 %v1025, 80
  %v1029 = vpop.permute.xlu0 %1028
  %v1033 = vsel %vm229, %v1006, 0
  %1035 = vmatprep.subr.bf16.mxu0 0
  %1036 = vmatpush1.bf16.msra.mxu0 %v1027
  %1037 = vmatprep.subr.bf16.mxu0 0
  %1038 = vmatpush1.bf16.msra.mxu0 %v1029
  %1039 = vmatprep.subr.bf16.mxu0 0
  %1040 = vmatpush1.bf16.msra.mxu0 0
  %1041 = vmatprep.subr.bf16.mxu0 0
  %1042 = vmatpush1.bf16.msra.mxu0 0
  %1043 = vmatprep.subr.bf16.mxu0 0
  %1044 = vmatpush1.bf16.msra.mxu0 0
  %1045 = vmatprep.subr.bf16.mxu0 0
  %1046 = vmatpush1.bf16.msra.mxu0 0
  %1047 = vmatprep.subr.bf16.mxu0 0
  %1048 = vmatpush1.bf16.msra.mxu0 0
  %1049 = vmatprep.subr.bf16.mxu0 0
  %1050 = vmatpush1.bf16.msra.mxu0 0
  %1051 = vmatprep.subr.bf16.mxu0 0
  %1052 = vmatpush1.bf16.msra.mxu0 0
  %1053 = vmatprep.subr.bf16.mxu0 0
  %1054 = vmatpush1.bf16.msra.mxu0 0
  %1055 = vmatprep.subr.bf16.mxu0 0
  %1056 = vmatpush1.bf16.msra.mxu0 0
  %1057 = vmatprep.subr.bf16.mxu0 0
  %1058 = vmatpush1.bf16.msra.mxu0 0
  %1059 = vmatprep.subr.bf16.mxu0 0
  %1060 = vmatpush1.bf16.msra.mxu0 0
  %1061 = vmatprep.subr.bf16.mxu0 0
  %1062 = vmatpush1.bf16.msra.mxu0 0
  %1063 = vmatprep.subr.bf16.mxu0 0
  %1064 = vmatpush1.bf16.msra.mxu0 0
  %1065 = vmatprep.subr.bf16.mxu0 0
  %1066 = vmatpush1.bf16.msra.mxu0 0
  %1067 = vmatprep.mubr.bf16.mxu0 0
  %1068 = vmatmul.mubr.bf16.gmra.mrb[0].mxu0 %v1033
  %v1069 = vpop.f32.mrb[0].mxu0
  %v1070 = vadd.f32 %v1015, %v1069
  %v1071 = vpop.f32.mrb[0].mxu0
  %v1072 = vpop.f32.mrb[0].mxu0
  %v1073 = vpop.f32.mrb[0].mxu0
  %1074 = vdwg.mxu0
  %vm1075 = vcmask 7168
  %1076 = vst.msk [vmem:[%s4] sm:$0xff] %vm1075, %v1070
  // Predicated region
  $region18: #{fwd.1} parent=0 // pred_check
    _
  $region19: #{fwd.1} parent=0 // pred_check_branch
    %1078 = sbr.rel (0) target = $region21
  $region20: #{fwd.1} parent=0 // pred_region
    _
  $region21: #{fwd.1} parent=0 // pred_fallthru
    _
  // Predicated region
  $region22: #{fwd.1} parent=0 // pred_check
    _
  $region23: #{fwd.1} parent=0 // pred_check_branch
    %1080 = sbr.rel (0) target = $region25
  $region24: #{fwd.1} parent=0 // pred_region
    _
  $region25: #{fwd.1} parent=0 // pred_fallthru
    _

</llo_original>
